<compile_context>
chip_gen: v5e
topology: v5e:2x2
jax: 0.10.0
libtpu: 0.0.40
codegen_flags: <defaults>
</compile_context>

<pallas_src>
import functools
import math

import jax
import jax.numpy as jnp
from jax import lax
from jax.experimental import pallas as pl
from jax.experimental.pallas import tpu as pltpu


def _round_up(x, m):
    return ((x + m - 1) // m) * m


# ----------------------------- fused Pallas kernel ---------------------------

def _fused_block_kernel(x_ref, w_ref, b_ref, gamma_ref, beta_ref, o_ref,
                        slab_ref, acc_ref, *, num_layers, k, left, L, Lpad,
                        seg, G, Gr, NB, c_out, res, eps):
    f32 = jnp.float32
    slab_dtype = slab_ref.dtype
    Cp = slab_ref.shape[0]
    W = NB * seg                          # width of the conv-output region

    # ---- stage the tile into the aligned, zero-padded working slab ---------
    # x was zero-padded to (Cp, seg) per sample in the wrapper, so the full
    # segment store re-deposits the intra-segment zero padding on every grid
    # step (no cross-step scratch state -> safe under megacore partitioning).
    if G:
        slab_ref[:, 0:G] = jnp.zeros((Cp, G), slab_dtype)
    if Gr:
        slab_ref[:, G + W:G + W + Gr] = jnp.zeros((Cp, Gr), slab_dtype)
    for n in range(NB):
        slab_ref[:, G + n * seg:G + (n + 1) * seg] = x_ref[n].astype(slab_dtype)

    # Column-validity mask over the conv-output region: inside each segment
    # only the first L columns are real outputs; everything else must become
    # the next layer's zero padding.
    lane = lax.broadcasted_iota(jnp.int32, (1, seg), 1)
    valid = jnp.concatenate([lane] * NB, axis=1) < L                # (1, W)

    # ---- conv layers: k per-tap matmuls accumulated in an f32 VMEM scratch -
    for i in range(num_layers):
        for dk in range(k):
            s = G - left + dk                                       # static
            part = jnp.dot(w_ref[i * k + dk], slab_ref[:, s:s + W],
                           preferred_element_type=f32)              # (Cp, W)
            if dk == 0:
                acc_ref[...] = part
            else:
                acc_ref[...] += part
        a = jnp.maximum(acc_ref[...] + b_ref[i].astype(f32), 0.0)
        a = jnp.where(valid, a, 0.0)
        # Aligned full-width write-back: data columns carry the activation,
        # every other column in [G, G+W) is re-zeroed (next layer's padding).
        slab_ref[:, G:G + W] = a.astype(slab_dtype)

    # ---- residual + LayerNorm over [c_out, L] (two-pass masked statistics) -
    gamma = gamma_ref[...].astype(f32)
    beta = beta_ref[...].astype(f32)
    row = lax.broadcasted_iota(jnp.int32, (Cp, Lpad), 0)
    col = lax.broadcasted_iota(jnp.int32, (Cp, Lpad), 1)
    mask2d = jnp.logical_and(row < c_out, col < L)
    inv_cnt = 1.0 / float(c_out * L)
    # TODO(synk): vectorize the residual + LN across all NB samples with one
    # wide masked reduction once x is also staged in the wide slab layout.
    for n in range(NB):
        off = G + n * seg
        y = slab_ref[:, off:off + Lpad].astype(f32)      # aligned; pads are 0
        if res:
            y = y + x_ref[n][:, :Lpad].astype(f32)       # pads of x are 0 too
        mean = jnp.sum(y, keepdims=True) * inv_cnt                  # (1, 1)
        d = jnp.where(mask2d, y - mean, 0.0)
        var = jnp.sum(d * d, keepdims=True) * inv_cnt               # (1, 1)
        inv = lax.rsqrt(var + eps)
        o_ref[n] = (d * inv * gamma + beta).astype(o_ref.dtype)     # lane-dense


# ----------------------------- wrapper ---------------------------------------

def _vmem_budget_and_limit():
    cap = 64 << 20                       # conservative fallback (v7x per-core)
    try:
        info = pltpu.get_tpu_info()
        cap = int(getattr(info, "vmem_capacity_bytes", cap)) or cap
    except Exception:
        pass
    return int(cap * 0.40), int(cap * 0.70)


def _pick_samples_per_block(N, Cp, Lpad, seg, G, Gr, num_layers, k,
                            xbytes, obytes, wbytes, sbytes, budget):
    cap = min(N, 64)                     # keep the unrolled loops reasonable
    if N >= 2:
        cap = min(cap, N // 2)           # >= 2 grid steps (v7x has 2 TCs)
    for cand in range(max(cap, 1), 0, -1):
        if N % cand:
            continue
        W = cand * seg
        est = (2 * cand * Cp * seg * xbytes           # x block, double-buffered
               + 2 * cand * Cp * Lpad * obytes        # out block, double-buffered
               + 2 * num_layers * k * Cp * Cp * wbytes  # conv weights (x2 bufs)
               + 2 * num_layers * Cp * 128 * 4        # biases (lane-padded)
               + 4 * Cp * Lpad * 4                    # gamma + beta (x2 bufs)
               + Cp * (G + W + Gr) * sbytes           # working-slab scratch
               + Cp * W * 4)                          # f32 accumulator scratch
        if est <= budget:
            return cand
    return 1


def epcot_conv_block_forward(x_ncl, w_all, b_all, gamma_pad, beta_pad, *,
                             out_dim, length, kernel_size, res, eps=1e-5,
                             samples_per_block=None):
    N, Cin, L = x_ncl.shape
    assert L == length
    num_layers = b_all.shape[0]
    Cp = w_all.shape[-1]
    matmul_dtype = w_all.dtype
    k = kernel_size
    left = (k - 1) // 2                  # PyTorch padding='same' split
    right = (k - 1) - left
    Lpad = gamma_pad.shape[-1]           # round_up(L, 128)
    seg = _round_up(L + k - 1, 128)      # per-sample 128-aligned segment
    G = _round_up(left, 128)             # leading guard (sample 0 left pad)
    Gr = _round_up(right, 128)           # trailing guard (last sample right pad)

    xbytes = jnp.dtype(x_ncl.dtype).itemsize
    sbytes = jnp.dtype(matmul_dtype).itemsize
    budget, vmem_limit = _vmem_budget_and_limit()
    if samples_per_block is None:
        NB = _pick_samples_per_block(N, Cp, Lpad, seg, G, Gr, num_layers, k,
                                     xbytes, xbytes, sbytes, sbytes, budget)
    else:
        NB = samples_per_block
    assert N % NB == 0, "samples_per_block must divide the batch size"
    W = NB * seg
    Ws = G + W + Gr

    # Zero-pad x to (N, Cp, seg): the per-sample load in the kernel then
    # re-deposits the intra-segment zero padding on every grid step.
    x_pad = jnp.pad(x_ncl, ((0, 0), (0, Cp - Cin), (0, seg - L)))

    kernel = functools.partial(
        _fused_block_kernel, num_layers=num_layers, k=k, left=left, L=L,
        Lpad=Lpad, seg=seg, G=G, Gr=Gr, NB=NB, c_out=out_dim, res=res, eps=eps)

    out_pad = pl.pallas_call(
        kernel,
        out_shape=jax.ShapeDtypeStruct((N, Cp, Lpad), x_ncl.dtype),
        grid_spec=pltpu.PrefetchScalarGridSpec(
            num_scalar_prefetch=0,
            grid=(N // NB,),
            in_specs=[
                pl.BlockSpec((NB, Cp, seg), lambda b: (b, 0, 0)),
                pl.BlockSpec(w_all.shape, lambda b: (0, 0, 0)),
                pl.BlockSpec(b_all.shape, lambda b: (0, 0, 0)),
                pl.BlockSpec(gamma_pad.shape, lambda b: (0, 0)),
                pl.BlockSpec(beta_pad.shape, lambda b: (0, 0)),
            ],
            out_specs=pl.BlockSpec((NB, Cp, Lpad), lambda b: (b, 0, 0)),
            scratch_shapes=[
                pltpu.VMEM((Cp, Ws), matmul_dtype),   # zero-padded working slab
                pltpu.VMEM((Cp, W), jnp.float32),     # per-layer conv accumulator
            ]),
        compiler_params=pltpu.CompilerParams(
            dimension_semantics=("parallel",),
            vmem_limit_bytes=vmem_limit),
    )(x_pad, w_all, b_all, gamma_pad, beta_pad)

    # Strip the lane/sublane padding added for dense stores.
    return out_pad[:, :out_dim, :L]


class EPCOTConvBlockPallas:
    def __init__(self, num_layers, in_dim, out_dim, dropout, kernel_size,
                 length, key, matmul_dtype=jnp.float32):
        del dropout   # nn.Dropout is created but never applied in forward()
        self.num_layers = num_layers
        self.in_dim = in_dim
        self.out_dim = out_dim
        self.kernel_size = kernel_size
        self.length = length
        self.res = (in_dim == out_dim)
        self.eps = 1e-5
        # TODO(synk): default matmul_dtype to bfloat16 on v6e/v7x in production
        # (f32 kept here so the test matches the f32 reference to 1e-4).
        self.matmul_dtype = matmul_dtype

        sub = max(8, 32 // jnp.dtype(matmul_dtype).itemsize)   # sublane multiple
        Cp = _round_up(max(in_dim, out_dim), sub)
        Lpad = _round_up(length, 128)
        self.Cp, self.Lpad = Cp, Lpad

        self.conv_params = []   # PyTorch layout (Cout, Cin, k), for the reference
        w_all = jnp.zeros((num_layers * kernel_size, Cp, Cp), matmul_dtype)
        b_all = jnp.zeros((num_layers, Cp, 1), jnp.float32)
        for i in range(num_layers):
            ci = in_dim if i == 0 else out_dim
            key, kw, kb = jax.random.split(key, 3)
            scale = 1.0 / math.sqrt(ci * kernel_size)
            w = jax.random.uniform(kw, (out_dim, ci, kernel_size),
                                   jnp.float32, -scale, scale)
            b = jax.random.uniform(kb, (out_dim,), jnp.float32, -scale, scale)
            self.conv_params.append((w, b))
            # Per-tap weight blocks, channel-padded to Cp once at init: zero
            # rows/cols are free on the MXU and keep every slab read/write
            # sublane-aligned (no repack relayouts in the kernel).
            w_taps = jnp.transpose(w, (2, 0, 1)).astype(matmul_dtype)  # (k,Co,ci)
            w_all = w_all.at[i * kernel_size:(i + 1) * kernel_size,
                             :out_dim, :ci].set(w_taps)
            b_all = b_all.at[i, :out_dim, 0].set(b)
        self.w_all, self.b_all = w_all, b_all

        key, kg, kb2 = jax.random.split(key, 3)
        # LayerNorm affine params, shape [out_dim, length] as in PyTorch (NCL).
        self.gamma = 1.0 + 0.1 * jax.random.normal(kg, (out_dim, length), jnp.float32)
        self.beta = 0.1 * jax.random.normal(kb2, (out_dim, length), jnp.float32)
        self.gamma_pad = (jnp.zeros((Cp, Lpad), jnp.float32)
                          .at[:out_dim, :length].set(self.gamma))
        self.beta_pad = (jnp.zeros((Cp, Lpad), jnp.float32)
                         .at[:out_dim, :length].set(self.beta))

    def __call__(self, x_ncl):
        return epcot_conv_block_forward(
            x_ncl, self.w_all, self.b_all, self.gamma_pad, self.beta_pad,
            out_dim=self.out_dim, length=self.length,
            kernel_size=self.kernel_size, res=self.res, eps=self.eps)


# ----------------------------- pure-JAX reference ----------------------------

def ref_forward(x_ncl, block, eps=1e-5):
    y = x_ncl
    k = block.kernel_size
    left = (k - 1) // 2
    right = (k - 1) - left
    for w, b in block.conv_params:
        out = lax.conv_general_dilated(
            y, w, window_strides=(1,), padding=[(left, right)],
            dimension_numbers=("NCH", "OIH", "NCH"))
        y = jnp.maximum(out + b[None, :, None], 0.0)
    if block.res:
        y = y + x_ncl
    mean = jnp.mean(y, axis=(1, 2), keepdims=True)
    var = jnp.mean(jnp.square(y - mean), axis=(1, 2), keepdims=True)
    y = (y - mean) / jnp.sqrt(var + eps)
    return y * block.gamma[None] + block.beta[None]


# ----------------------------- main -------------------------------------------

def _run_case(key, num_layers, in_dim, out_dim, kernel_size, length, batch):
    kx, kp = jax.random.split(key)
    x = jax.random.normal(kx, (batch, in_dim, length), jnp.float32)  # NCL
    block = EPCOTConvBlockPallas(num_layers, in_dim, out_dim, 0.1,
                                 kernel_size, length, kp)
    out = jax.block_until_ready(block(x))
    ref = jax.block_until_ready(ref_forward(x, block))
    assert out.shape == (batch, out_dim, length)
    err = jnp.max(jnp.abs(out - ref))
    assert jnp.allclose(out, ref, atol=1e-4, rtol=1e-4), (
        f"case {(num_layers, in_dim, out_dim, kernel_size, length, batch)}: "
        f"max abs err = {err}")


if __name__ == "__main__":
    k1, k2 = jax.random.split(jax.random.PRNGKey(0))
    # Residual path (in_dim == out_dim), 2 conv layers.
    _run_case(k1, num_layers=2, in_dim=8, out_dim=8, kernel_size=5,
              length=16, batch=2)
    # Non-residual path exercising channel padding (Cin=4 -> Cp=8) and
    # odd length / odd batch, 3 conv layers.
    _run_case(k2, num_layers=3, in_dim=4, out_dim=8, kernel_size=3,
              length=10, batch=3)
    print("KERNEL_OK")
</pallas_src>

<mosaic_0001>
module attributes {stable_mosaic.version = 11 : i64} {
  func.func @_fused_block_kernel(%arg0: i32, %arg1: memref<1x8x128xf32, #tpu.memory_space<vmem>>, %arg2: memref<10x8x8xf32, #tpu.memory_space<vmem>>, %arg3: memref<2x8x1xf32, #tpu.memory_space<vmem>>, %arg4: memref<8x128xf32, #tpu.memory_space<vmem>>, %arg5: memref<8x128xf32, #tpu.memory_space<vmem>>, %arg6: memref<1x8x128xf32, #tpu.memory_space<vmem>>, %arg7: memref<8x384xf32, #tpu.memory_space<vmem>>, %arg8: memref<8x128xf32, #tpu.memory_space<vmem>>) attributes {dimension_semantics = [#tpu.dimension_semantics<parallel>], iteration_bounds = array<i64: 2>, scalar_prefetch = 0 : i64, scratch_operands = 2 : i64, tpu.core_type = #tpu.core_type<tc>, window_params = [{transform_indices = @transform_0, window_bounds = array<i64: 1, 8, 128>}, {pipeline_mode = #tpu.pipeline_mode<synchronous>, transform_indices = @transform_1, window_bounds = array<i64: 10, 8, 8>}, {pipeline_mode = #tpu.pipeline_mode<synchronous>, transform_indices = @transform_2, window_bounds = array<i64: 2, 8, 1>}, {pipeline_mode = #tpu.pipeline_mode<synchronous>, transform_indices = @transform_3, window_bounds = array<i64: 8, 128>}, {pipeline_mode = #tpu.pipeline_mode<synchronous>, transform_indices = @transform_4, window_bounds = array<i64: 8, 128>}, {transform_indices = @transform_5, window_bounds = array<i64: 1, 8, 128>}]} {
    %cst = arith.constant 0.000000e+00 : f32
    %0 = vector.broadcast %cst : f32 to vector<8x128xf32>
    %c0 = arith.constant 0 : index
    %c0_0 = arith.constant 0 : index
    %1 = vector.load %arg7[%c0, %c0_0] : memref<8x384xf32, #tpu.memory_space<vmem>>, vector<8x128xf32>
    tpu.vector_store %arg7[%c0, %c0_0], %0 {strides = array<i32>} : memref<8x384xf32, #tpu.memory_space<vmem>>, vector<8x128xf32>,
    %cst_1 = arith.constant 0.000000e+00 : f32
    %2 = vector.broadcast %cst_1 : f32 to vector<8x128xf32>
    %c0_2 = arith.constant 0 : index
    %c256 = arith.constant 256 : index
    %3 = vector.load %arg7[%c0_2, %c256] : memref<8x384xf32, #tpu.memory_space<vmem>>, vector<8x128xf32>
    tpu.vector_store %arg7[%c0_2, %c256], %2 {strides = array<i32>} : memref<8x384xf32, #tpu.memory_space<vmem>>, vector<8x128xf32>,
    %c0_3 = arith.constant 0 : index
    %c0_4 = arith.constant 0 : index
    %c0_5 = arith.constant 0 : index
    %4 = vector.load %arg1[%c0_3, %c0_4, %c0_5] : memref<1x8x128xf32, #tpu.memory_space<vmem>>, vector<1x8x128xf32>
    %5 = vector.shape_cast %4 : vector<1x8x128xf32> to vector<8x128xf32>
    %c0_6 = arith.constant 0 : index
    %c128 = arith.constant 128 : index
    %6 = vector.load %arg7[%c0_6, %c128] : memref<8x384xf32, #tpu.memory_space<vmem>>, vector<8x128xf32>
    tpu.vector_store %arg7[%c0_6, %c128], %5 {strides = array<i32>} : memref<8x384xf32, #tpu.memory_space<vmem>>, vector<8x128xf32>,
    %7 = tpu.iota {dimensions = array<i32: 1>} : vector<1x128xi32>
    %c16_i32 = arith.constant 16 : i32
    %8 = vector.broadcast %c16_i32 : i32 to vector<1x128xi32>
    %9 = arith.cmpi slt, %7, %8 : vector<1x128xi32>
    %c0_7 = arith.constant 0 : index
    %c0_8 = arith.constant 0 : index
    %c0_9 = arith.constant 0 : index
    %10 = vector.load %arg2[%c0_7, %c0_8, %c0_9] : memref<10x8x8xf32, #tpu.memory_space<vmem>>, vector<1x8x8xf32>
    %11 = vector.shape_cast %10 : vector<1x8x8xf32> to vector<8x8xf32>
    %c0_10 = arith.constant 0 : index
    %c126 = arith.constant 126 : index
    %12 = vector.load %arg7[%c0_10, %c126] : memref<8x384xf32, #tpu.memory_space<vmem>>, vector<8x128xf32>
    %cst_11 = arith.constant dense<0.000000e+00> : vector<8x128xf32>
    %13 = tpu.matmul %11, %12, %cst_11 {dimension_numbers = #tpu.dot_dimension_numbers<[1], [0], [0], [1], [0, 0, 1, 1], [], []>} : vector<8x8xf32>, vector<8x128xf32>, vector<8x128xf32> -> vector<8x128xf32>
    %c0_12 = arith.constant 0 : index
    %c0_13 = arith.constant 0 : index
    %14 = vector.load %arg8[%c0_12, %c0_13] : memref<8x128xf32, #tpu.memory_space<vmem>>, vector<8x128xf32>
    tpu.vector_store %arg8[%c0_12, %c0_13], %13 {strides = array<i32>} : memref<8x128xf32, #tpu.memory_space<vmem>>, vector<8x128xf32>,
    %c1 = arith.constant 1 : index
    %c0_14 = arith.constant 0 : index
    %c0_15 = arith.constant 0 : index
    %15 = vector.load %arg2[%c1, %c0_14, %c0_15] : memref<10x8x8xf32, #tpu.memory_space<vmem>>, vector<1x8x8xf32>
    %16 = vector.shape_cast %15 : vector<1x8x8xf32> to vector<8x8xf32>
    %c0_16 = arith.constant 0 : index
    %c127 = arith.constant 127 : index
    %17 = vector.load %arg7[%c0_16, %c127] : memref<8x384xf32, #tpu.memory_space<vmem>>, vector<8x128xf32>
    %cst_17 = arith.constant dense<0.000000e+00> : vector<8x128xf32>
    %18 = tpu.matmul %16, %17, %cst_17 {dimension_numbers = #tpu.dot_dimension_numbers<[1], [0], [0], [1], [0, 0, 1, 1], [], []>} : vector<8x8xf32>, vector<8x128xf32>, vector<8x128xf32> -> vector<8x128xf32>
    %c0_18 = arith.constant 0 : index
    %c0_19 = arith.constant 0 : index
    %19 = vector.load %arg8[%c0_18, %c0_19] : memref<8x128xf32, #tpu.memory_space<vmem>>, vector<8x128xf32>
    %20 = arith.addf %19, %18 : vector<8x128xf32>
    %c0_20 = arith.constant 0 : index
    %c0_21 = arith.constant 0 : index
    %21 = vector.load %arg8[%c0_20, %c0_21] : memref<8x128xf32, #tpu.memory_space<vmem>>, vector<8x128xf32>
    tpu.vector_store %arg8[%c0_20, %c0_21], %20 {strides = array<i32>} : memref<8x128xf32, #tpu.memory_space<vmem>>, vector<8x128xf32>,
    %c2 = arith.constant 2 : index
    %c0_22 = arith.constant 0 : index
    %c0_23 = arith.constant 0 : index
    %22 = vector.load %arg2[%c2, %c0_22, %c0_23] : memref<10x8x8xf32, #tpu.memory_space<vmem>>, vector<1x8x8xf32>
    %23 = vector.shape_cast %22 : vector<1x8x8xf32> to vector<8x8xf32>
    %c0_24 = arith.constant 0 : index
    %c128_25 = arith.constant 128 : index
    %24 = vector.load %arg7[%c0_24, %c128_25] : memref<8x384xf32, #tpu.memory_space<vmem>>, vector<8x128xf32>
    %cst_26 = arith.constant dense<0.000000e+00> : vector<8x128xf32>
    %25 = tpu.matmul %23, %24, %cst_26 {dimension_numbers = #tpu.dot_dimension_numbers<[1], [0], [0], [1], [0, 0, 1, 1], [], []>} : vector<8x8xf32>, vector<8x128xf32>, vector<8x128xf32> -> vector<8x128xf32>
    %c0_27 = arith.constant 0 : index
    %c0_28 = arith.constant 0 : index
    %26 = vector.load %arg8[%c0_27, %c0_28] : memref<8x128xf32, #tpu.memory_space<vmem>>, vector<8x128xf32>
    %27 = arith.addf %26, %25 : vector<8x128xf32>
    %c0_29 = arith.constant 0 : index
    %c0_30 = arith.constant 0 : index
    %28 = vector.load %arg8[%c0_29, %c0_30] : memref<8x128xf32, #tpu.memory_space<vmem>>, vector<8x128xf32>
    tpu.vector_store %arg8[%c0_29, %c0_30], %27 {strides = array<i32>} : memref<8x128xf32, #tpu.memory_space<vmem>>, vector<8x128xf32>,
    %c3 = arith.constant 3 : index
    %c0_31 = arith.constant 0 : index
    %c0_32 = arith.constant 0 : index
    %29 = vector.load %arg2[%c3, %c0_31, %c0_32] : memref<10x8x8xf32, #tpu.memory_space<vmem>>, vector<1x8x8xf32>
    %30 = vector.shape_cast %29 : vector<1x8x8xf32> to vector<8x8xf32>
    %c0_33 = arith.constant 0 : index
    %c129 = arith.constant 129 : index
    %31 = vector.load %arg7[%c0_33, %c129] : memref<8x384xf32, #tpu.memory_space<vmem>>, vector<8x128xf32>
    %cst_34 = arith.constant dense<0.000000e+00> : vector<8x128xf32>
    %32 = tpu.matmul %30, %31, %cst_34 {dimension_numbers = #tpu.dot_dimension_numbers<[1], [0], [0], [1], [0, 0, 1, 1], [], []>} : vector<8x8xf32>, vector<8x128xf32>, vector<8x128xf32> -> vector<8x128xf32>
    %c0_35 = arith.constant 0 : index
    %c0_36 = arith.constant 0 : index
    %33 = vector.load %arg8[%c0_35, %c0_36] : memref<8x128xf32, #tpu.memory_space<vmem>>, vector<8x128xf32>
    %34 = arith.addf %33, %32 : vector<8x128xf32>
    %c0_37 = arith.constant 0 : index
    %c0_38 = arith.constant 0 : index
    %35 = vector.load %arg8[%c0_37, %c0_38] : memref<8x128xf32, #tpu.memory_space<vmem>>, vector<8x128xf32>
    tpu.vector_store %arg8[%c0_37, %c0_38], %34 {strides = array<i32>} : memref<8x128xf32, #tpu.memory_space<vmem>>, vector<8x128xf32>,
    %c4 = arith.constant 4 : index
    %c0_39 = arith.constant 0 : index
    %c0_40 = arith.constant 0 : index
    %36 = vector.load %arg2[%c4, %c0_39, %c0_40] : memref<10x8x8xf32, #tpu.memory_space<vmem>>, vector<1x8x8xf32>
    %37 = vector.shape_cast %36 : vector<1x8x8xf32> to vector<8x8xf32>
    %c0_41 = arith.constant 0 : index
    %c130 = arith.constant 130 : index
    %38 = vector.load %arg7[%c0_41, %c130] : memref<8x384xf32, #tpu.memory_space<vmem>>, vector<8x128xf32>
    %cst_42 = arith.constant dense<0.000000e+00> : vector<8x128xf32>
    %39 = tpu.matmul %37, %38, %cst_42 {dimension_numbers = #tpu.dot_dimension_numbers<[1], [0], [0], [1], [0, 0, 1, 1], [], []>} : vector<8x8xf32>, vector<8x128xf32>, vector<8x128xf32> -> vector<8x128xf32>
    %c0_43 = arith.constant 0 : index
    %c0_44 = arith.constant 0 : index
    %40 = vector.load %arg8[%c0_43, %c0_44] : memref<8x128xf32, #tpu.memory_space<vmem>>, vector<8x128xf32>
    %41 = arith.addf %40, %39 : vector<8x128xf32>
    %c0_45 = arith.constant 0 : index
    %c0_46 = arith.constant 0 : index
    %42 = vector.load %arg8[%c0_45, %c0_46] : memref<8x128xf32, #tpu.memory_space<vmem>>, vector<8x128xf32>
    tpu.vector_store %arg8[%c0_45, %c0_46], %41 {strides = array<i32>} : memref<8x128xf32, #tpu.memory_space<vmem>>, vector<8x128xf32>,
    %c0_47 = arith.constant 0 : index
    %c0_48 = arith.constant 0 : index
    %43 = vector.load %arg8[%c0_47, %c0_48] : memref<8x128xf32, #tpu.memory_space<vmem>>, vector<8x128xf32>
    %c0_49 = arith.constant 0 : index
    %c0_50 = arith.constant 0 : index
    %c0_51 = arith.constant 0 : index
    %44 = vector.load %arg3[%c0_49, %c0_50, %c0_51] : memref<2x8x1xf32, #tpu.memory_space<vmem>>, vector<1x8x1xf32>
    %45 = vector.shape_cast %44 : vector<1x8x1xf32> to vector<8x1xf32>
    %46 = vector.broadcast %45 : vector<8x1xf32> to vector<8x128xf32>
    %47 = arith.addf %43, %46 : vector<8x128xf32>
    %cst_52 = arith.constant 0.000000e+00 : f32
    %48 = vector.broadcast %cst_52 : f32 to vector<8x128xf32>
    %49 = arith.maximumf %47, %48 : vector<8x128xf32>
    %cst_53 = arith.constant 0.000000e+00 : f32
    %50 = vector.shape_cast %9 : vector<1x128xi1> to vector<1x128xi1>
    %51 = vector.broadcast %50 : vector<1x128xi1> to vector<8x128xi1>
    %52 = vector.broadcast %cst_53 : f32 to vector<8x128xf32>
    %53 = arith.select %51, %49, %52 : vector<8x128xi1>, vector<8x128xf32>
    %c0_54 = arith.constant 0 : index
    %c128_55 = arith.constant 128 : index
    %54 = vector.load %arg7[%c0_54, %c128_55] : memref<8x384xf32, #tpu.memory_space<vmem>>, vector<8x128xf32>
    tpu.vector_store %arg7[%c0_54, %c128_55], %53 {strides = array<i32>} : memref<8x384xf32, #tpu.memory_space<vmem>>, vector<8x128xf32>,
    %c5 = arith.constant 5 : index
    %c0_56 = arith.constant 0 : index
    %c0_57 = arith.constant 0 : index
    %55 = vector.load %arg2[%c5, %c0_56, %c0_57] : memref<10x8x8xf32, #tpu.memory_space<vmem>>, vector<1x8x8xf32>
    %56 = vector.shape_cast %55 : vector<1x8x8xf32> to vector<8x8xf32>
    %c0_58 = arith.constant 0 : index
    %c126_59 = arith.constant 126 : index
    %57 = vector.load %arg7[%c0_58, %c126_59] : memref<8x384xf32, #tpu.memory_space<vmem>>, vector<8x128xf32>
    %cst_60 = arith.constant dense<0.000000e+00> : vector<8x128xf32>
    %58 = tpu.matmul %56, %57, %cst_60 {dimension_numbers = #tpu.dot_dimension_numbers<[1], [0], [0], [1], [0, 0, 1, 1], [], []>} : vector<8x8xf32>, vector<8x128xf32>, vector<8x128xf32> -> vector<8x128xf32>
    %c0_61 = arith.constant 0 : index
    %c0_62 = arith.constant 0 : index
    %59 = vector.load %arg8[%c0_61, %c0_62] : memref<8x128xf32, #tpu.memory_space<vmem>>, vector<8x128xf32>
    tpu.vector_store %arg8[%c0_61, %c0_62], %58 {strides = array<i32>} : memref<8x128xf32, #tpu.memory_space<vmem>>, vector<8x128xf32>,
    %c6 = arith.constant 6 : index
    %c0_63 = arith.constant 0 : index
    %c0_64 = arith.constant 0 : index
    %60 = vector.load %arg2[%c6, %c0_63, %c0_64] : memref<10x8x8xf32, #tpu.memory_space<vmem>>, vector<1x8x8xf32>
    %61 = vector.shape_cast %60 : vector<1x8x8xf32> to vector<8x8xf32>
    %c0_65 = arith.constant 0 : index
    %c127_66 = arith.constant 127 : index
    %62 = vector.load %arg7[%c0_65, %c127_66] : memref<8x384xf32, #tpu.memory_space<vmem>>, vector<8x128xf32>
    %cst_67 = arith.constant dense<0.000000e+00> : vector<8x128xf32>
    %63 = tpu.matmul %61, %62, %cst_67 {dimension_numbers = #tpu.dot_dimension_numbers<[1], [0], [0], [1], [0, 0, 1, 1], [], []>} : vector<8x8xf32>, vector<8x128xf32>, vector<8x128xf32> -> vector<8x128xf32>
    %c0_68 = arith.constant 0 : index
    %c0_69 = arith.constant 0 : index
    %64 = vector.load %arg8[%c0_68, %c0_69] : memref<8x128xf32, #tpu.memory_space<vmem>>, vector<8x128xf32>
    %65 = arith.addf %64, %63 : vector<8x128xf32>
    %c0_70 = arith.constant 0 : index
    %c0_71 = arith.constant 0 : index
    %66 = vector.load %arg8[%c0_70, %c0_71] : memref<8x128xf32, #tpu.memory_space<vmem>>, vector<8x128xf32>
    tpu.vector_store %arg8[%c0_70, %c0_71], %65 {strides = array<i32>} : memref<8x128xf32, #tpu.memory_space<vmem>>, vector<8x128xf32>,
    %c7 = arith.constant 7 : index
    %c0_72 = arith.constant 0 : index
    %c0_73 = arith.constant 0 : index
    %67 = vector.load %arg2[%c7, %c0_72, %c0_73] : memref<10x8x8xf32, #tpu.memory_space<vmem>>, vector<1x8x8xf32>
    %68 = vector.shape_cast %67 : vector<1x8x8xf32> to vector<8x8xf32>
    %c0_74 = arith.constant 0 : index
    %c128_75 = arith.constant 128 : index
    %69 = vector.load %arg7[%c0_74, %c128_75] : memref<8x384xf32, #tpu.memory_space<vmem>>, vector<8x128xf32>
    %cst_76 = arith.constant dense<0.000000e+00> : vector<8x128xf32>
    %70 = tpu.matmul %68, %69, %cst_76 {dimension_numbers = #tpu.dot_dimension_numbers<[1], [0], [0], [1], [0, 0, 1, 1], [], []>} : vector<8x8xf32>, vector<8x128xf32>, vector<8x128xf32> -> vector<8x128xf32>
    %c0_77 = arith.constant 0 : index
    %c0_78 = arith.constant 0 : index
    %71 = vector.load %arg8[%c0_77, %c0_78] : memref<8x128xf32, #tpu.memory_space<vmem>>, vector<8x128xf32>
    %72 = arith.addf %71, %70 : vector<8x128xf32>
    %c0_79 = arith.constant 0 : index
    %c0_80 = arith.constant 0 : index
    %73 = vector.load %arg8[%c0_79, %c0_80] : memref<8x128xf32, #tpu.memory_space<vmem>>, vector<8x128xf32>
    tpu.vector_store %arg8[%c0_79, %c0_80], %72 {strides = array<i32>} : memref<8x128xf32, #tpu.memory_space<vmem>>, vector<8x128xf32>,
    %c8 = arith.constant 8 : index
    %c0_81 = arith.constant 0 : index
    %c0_82 = arith.constant 0 : index
    %74 = vector.load %arg2[%c8, %c0_81, %c0_82] : memref<10x8x8xf32, #tpu.memory_space<vmem>>, vector<1x8x8xf32>
    %75 = vector.shape_cast %74 : vector<1x8x8xf32> to vector<8x8xf32>
    %c0_83 = arith.constant 0 : index
    %c129_84 = arith.constant 129 : index
    %76 = vector.load %arg7[%c0_83, %c129_84] : memref<8x384xf32, #tpu.memory_space<vmem>>, vector<8x128xf32>
    %cst_85 = arith.constant dense<0.000000e+00> : vector<8x128xf32>
    %77 = tpu.matmul %75, %76, %cst_85 {dimension_numbers = #tpu.dot_dimension_numbers<[1], [0], [0], [1], [0, 0, 1, 1], [], []>} : vector<8x8xf32>, vector<8x128xf32>, vector<8x128xf32> -> vector<8x128xf32>
    %c0_86 = arith.constant 0 : index
    %c0_87 = arith.constant 0 : index
    %78 = vector.load %arg8[%c0_86, %c0_87] : memref<8x128xf32, #tpu.memory_space<vmem>>, vector<8x128xf32>
    %79 = arith.addf %78, %77 : vector<8x128xf32>
    %c0_88 = arith.constant 0 : index
    %c0_89 = arith.constant 0 : index
    %80 = vector.load %arg8[%c0_88, %c0_89] : memref<8x128xf32, #tpu.memory_space<vmem>>, vector<8x128xf32>
    tpu.vector_store %arg8[%c0_88, %c0_89], %79 {strides = array<i32>} : memref<8x128xf32, #tpu.memory_space<vmem>>, vector<8x128xf32>,
    %c9 = arith.constant 9 : index
    %c0_90 = arith.constant 0 : index
    %c0_91 = arith.constant 0 : index
    %81 = vector.load %arg2[%c9, %c0_90, %c0_91] : memref<10x8x8xf32, #tpu.memory_space<vmem>>, vector<1x8x8xf32>
    %82 = vector.shape_cast %81 : vector<1x8x8xf32> to vector<8x8xf32>
    %c0_92 = arith.constant 0 : index
    %c130_93 = arith.constant 130 : index
    %83 = vector.load %arg7[%c0_92, %c130_93] : memref<8x384xf32, #tpu.memory_space<vmem>>, vector<8x128xf32>
    %cst_94 = arith.constant dense<0.000000e+00> : vector<8x128xf32>
    %84 = tpu.matmul %82, %83, %cst_94 {dimension_numbers = #tpu.dot_dimension_numbers<[1], [0], [0], [1], [0, 0, 1, 1], [], []>} : vector<8x8xf32>, vector<8x128xf32>, vector<8x128xf32> -> vector<8x128xf32>
    %c0_95 = arith.constant 0 : index
    %c0_96 = arith.constant 0 : index
    %85 = vector.load %arg8[%c0_95, %c0_96] : memref<8x128xf32, #tpu.memory_space<vmem>>, vector<8x128xf32>
    %86 = arith.addf %85, %84 : vector<8x128xf32>
    %c0_97 = arith.constant 0 : index
    %c0_98 = arith.constant 0 : index
    %87 = vector.load %arg8[%c0_97, %c0_98] : memref<8x128xf32, #tpu.memory_space<vmem>>, vector<8x128xf32>
    tpu.vector_store %arg8[%c0_97, %c0_98], %86 {strides = array<i32>} : memref<8x128xf32, #tpu.memory_space<vmem>>, vector<8x128xf32>,
    %c0_99 = arith.constant 0 : index
    %c0_100 = arith.constant 0 : index
    %88 = vector.load %arg8[%c0_99, %c0_100] : memref<8x128xf32, #tpu.memory_space<vmem>>, vector<8x128xf32>
    %c1_101 = arith.constant 1 : index
    %c0_102 = arith.constant 0 : index
    %c0_103 = arith.constant 0 : index
    %89 = vector.load %arg3[%c1_101, %c0_102, %c0_103] : memref<2x8x1xf32, #tpu.memory_space<vmem>>, vector<1x8x1xf32>
    %90 = vector.shape_cast %89 : vector<1x8x1xf32> to vector<8x1xf32>
    %91 = vector.broadcast %90 : vector<8x1xf32> to vector<8x128xf32>
    %92 = arith.addf %88, %91 : vector<8x128xf32>
    %cst_104 = arith.constant 0.000000e+00 : f32
    %93 = vector.broadcast %cst_104 : f32 to vector<8x128xf32>
    %94 = arith.maximumf %92, %93 : vector<8x128xf32>
    %cst_105 = arith.constant 0.000000e+00 : f32
    %95 = vector.shape_cast %9 : vector<1x128xi1> to vector<1x128xi1>
    %96 = vector.broadcast %95 : vector<1x128xi1> to vector<8x128xi1>
    %97 = vector.broadcast %cst_105 : f32 to vector<8x128xf32>
    %98 = arith.select %96, %94, %97 : vector<8x128xi1>, vector<8x128xf32>
    %c0_106 = arith.constant 0 : index
    %c128_107 = arith.constant 128 : index
    %99 = vector.load %arg7[%c0_106, %c128_107] : memref<8x384xf32, #tpu.memory_space<vmem>>, vector<8x128xf32>
    tpu.vector_store %arg7[%c0_106, %c128_107], %98 {strides = array<i32>} : memref<8x384xf32, #tpu.memory_space<vmem>>, vector<8x128xf32>,
    %c0_108 = arith.constant 0 : index
    %c0_109 = arith.constant 0 : index
    %100 = vector.load %arg4[%c0_108, %c0_109] : memref<8x128xf32, #tpu.memory_space<vmem>>, vector<8x128xf32>
    %c0_110 = arith.constant 0 : index
    %c0_111 = arith.constant 0 : index
    %101 = vector.load %arg5[%c0_110, %c0_111] : memref<8x128xf32, #tpu.memory_space<vmem>>, vector<8x128xf32>
    %102 = tpu.iota {dimensions = array<i32: 0>} : vector<8x128xi32>
    %103 = tpu.iota {dimensions = array<i32: 1>} : vector<8x128xi32>
    %c8_i32 = arith.constant 8 : i32
    %104 = vector.broadcast %c8_i32 : i32 to vector<8x128xi32>
    %105 = arith.cmpi slt, %102, %104 : vector<8x128xi32>
    %c16_i32_112 = arith.constant 16 : i32
    %106 = vector.broadcast %c16_i32_112 : i32 to vector<8x128xi32>
    %107 = arith.cmpi slt, %103, %106 : vector<8x128xi32>
    %108 = arith.andi %105, %107 : vector<8x128xi1>
    %c0_113 = arith.constant 0 : index
    %c128_114 = arith.constant 128 : index
    %109 = vector.load %arg7[%c0_113, %c128_114] : memref<8x384xf32, #tpu.memory_space<vmem>>, vector<8x128xf32>
    %c0_115 = arith.constant 0 : index
    %c0_116 = arith.constant 0 : index
    %c0_117 = arith.constant 0 : index
    %110 = vector.load %arg1[%c0_115, %c0_116, %c0_117] : memref<1x8x128xf32, #tpu.memory_space<vmem>>, vector<1x8x128xf32>
    %111 = vector.shape_cast %110 : vector<1x8x128xf32> to vector<8x128xf32>
    %112 = arith.addf %109, %111 : vector<8x128xf32>
    %113 = vector.shape_cast %112 : vector<8x128xf32> to vector<1x8x128xf32>
    %cst_118 = arith.constant dense<0.000000e+00> : vector<1xf32>
    %114 = vector.multi_reduction <add>, %113, %cst_118 [1, 2] : vector<1x8x128xf32> to vector<1xf32>
    %115 = vector.shape_cast %114 : vector<1xf32> to vector<1x1x1xf32>
    %116 = vector.extract %115[0, 0, 0] : f32 from vector<1x1x1xf32>
    %117 = vector.broadcast %116 : f32 to vector<1x1xf32>
    %cst_119 = arith.constant 7.812500e-03 : f32
    %118 = vector.broadcast %cst_119 : f32 to vector<1x1xf32>
    %119 = arith.mulf %117, %118 : vector<1x1xf32>
    %120 = vector.broadcast %119 : vector<1x1xf32> to vector<8x128xf32>
    %121 = arith.subf %112, %120 : vector<8x128xf32>
    %cst_120 = arith.constant 0.000000e+00 : f32
    %122 = vector.broadcast %cst_120 : f32 to vector<8x128xf32>
    %123 = arith.select %108, %121, %122 : vector<8x128xi1>, vector<8x128xf32>
    %124 = arith.mulf %123, %123 : vector<8x128xf32>
    %125 = vector.shape_cast %124 : vector<8x128xf32> to vector<1x8x128xf32>
    %cst_121 = arith.constant dense<0.000000e+00> : vector<1xf32>
    %126 = vector.multi_reduction <add>, %125, %cst_121 [1, 2] : vector<1x8x128xf32> to vector<1xf32>
    %127 = vector.shape_cast %126 : vector<1xf32> to vector<1x1x1xf32>
    %128 = vector.extract %127[0, 0, 0] : f32 from vector<1x1x1xf32>
    %129 = vector.broadcast %128 : f32 to vector<1x1xf32>
    %cst_122 = arith.constant 7.812500e-03 : f32
    %130 = vector.broadcast %cst_122 : f32 to vector<1x1xf32>
    %131 = arith.mulf %129, %130 : vector<1x1xf32>
    %cst_123 = arith.constant 9.99999974E-6 : f32
    %132 = vector.broadcast %cst_123 : f32 to vector<1x1xf32>
    %133 = arith.addf %131, %132 : vector<1x1xf32>
    %134 = math.rsqrt %133 : vector<1x1xf32>
    %135 = vector.broadcast %134 : vector<1x1xf32> to vector<8x128xf32>
    %136 = arith.mulf %123, %135 : vector<8x128xf32>
    %137 = arith.mulf %136, %100 : vector<8x128xf32>
    %138 = arith.addf %137, %101 : vector<8x128xf32>
    %c0_124 = arith.constant 0 : index
    %c0_125 = arith.constant 0 : index
    %c0_126 = arith.constant 0 : index
    %139 = vector.load %arg6[%c0_124, %c0_125, %c0_126] : memref<1x8x128xf32, #tpu.memory_space<vmem>>, vector<1x8x128xf32>
    %140 = vector.shape_cast %139 : vector<1x8x128xf32> to vector<8x128xf32>
    %141 = vector.shape_cast %138 : vector<8x128xf32> to vector<1x8x128xf32>
    tpu.vector_store %arg6[%c0_124, %c0_125, %c0_126], %141 {strides = array<i32>} : memref<1x8x128xf32, #tpu.memory_space<vmem>>, vector<1x8x128xf32>,
    return
  }
  func.func @transform_0(%arg0: i32) -> (i32, i32, i32) {
    %c0_i32 = arith.constant 0 : i32
    %c0_i32_0 = arith.constant 0 : i32
    %c0_i32_1 = arith.constant 0 : i32
    return %arg0, %c0_i32, %c0_i32_0 : i32, i32, i32
  }
  func.func @transform_1(%arg0: i32) -> (i32, i32, i32) {
    %c0_i32 = arith.constant 0 : i32
    %c0_i32_0 = arith.constant 0 : i32
    %c0_i32_1 = arith.constant 0 : i32
    %c0_i32_2 = arith.constant 0 : i32
    return %c0_i32, %c0_i32_0, %c0_i32_1 : i32, i32, i32
  }
  func.func @transform_2(%arg0: i32) -> (i32, i32, i32) {
    %c0_i32 = arith.constant 0 : i32
    %c0_i32_0 = arith.constant 0 : i32
    %c0_i32_1 = arith.constant 0 : i32
    %c0_i32_2 = arith.constant 0 : i32
    return %c0_i32, %c0_i32_0, %c0_i32_1 : i32, i32, i32
  }
  func.func @transform_3(%arg0: i32) -> (i32, i32) {
    %c0_i32 = arith.constant 0 : i32
    %c0_i32_0 = arith.constant 0 : i32
    %c0_i32_1 = arith.constant 0 : i32
    return %c0_i32, %c0_i32_0 : i32, i32
  }
  func.func @transform_4(%arg0: i32) -> (i32, i32) {
    %c0_i32 = arith.constant 0 : i32
    %c0_i32_0 = arith.constant 0 : i32
    %c0_i32_1 = arith.constant 0 : i32
    return %c0_i32, %c0_i32_0 : i32, i32
  }
  func.func @transform_5(%arg0: i32) -> (i32, i32, i32) {
    %c0_i32 = arith.constant 0 : i32
    %c0_i32_0 = arith.constant 0 : i32
    %c0_i32_1 = arith.constant 0 : i32
    return %arg0, %c0_i32, %c0_i32_0 : i32, i32, i32
  }
}

</mosaic_0001>

<llo_original>
// kernel: tpu_custom_call.1
$region0: #{tpu_custom_call.1}
  #allocation0 [shape = 'u32[]', space=smem, size = 0x4, offset = 0x4, fixed_abs, tag = 'smem constant byte address 0x4 - core index']
  #allocation1 [shape = 'u32[72,128]{1,0:T(1,128)}', space=vmem, size = 0x9000, scoped, tag = 'internal scratch']
  #allocation2 [shape = 'f32[8,384]{1,0:T(8,128)}', space=vmem, size = 0x3000, scoped, tag = 'scratch operand']
  #allocation3 [shape = 'f32[8,128]{1,0:T(8,128)}', space=vmem, size = 0x1000, scoped, tag = 'scratch operand']
  %s0 = inlined_call_operand.vmem [shape: f32[2,8,128], index: 0, kind: input, shape index: {}]
  %s1 = inlined_call_operand.vmem [shape: f32[10,8,8], index: 1, kind: input, shape index: {}]
  %s2 = inlined_call_operand.vmem [shape: f32[2,8,1], index: 2, kind: input, shape index: {}]
  %s3 = inlined_call_operand.vmem [shape: f32[8,128], index: 3, kind: input, shape index: {}]
  %s4 = inlined_call_operand.vmem [shape: f32[8,128], index: 4, kind: input, shape index: {}]
  %s5 = inlined_call_operand.hbm [shape: f32[2,8,128], index: 5, kind: output, shape index: {}]
  %s6 = sld [smem:[#allocation0]]
  $region53: #{tpu_custom_call.1} parent=0
    _
  %s8 = ssub.s32 1, %s6
  %s9 = scalar_select 0, %s8, %s6
  $region1: #{tpu_custom_call.1} parent=0
    #allocation4 [shape = 'u8[8192]{0}', space=vmem, size = 0x2000, scoped, tag = 'output window, operand 0']
    #allocation5 [shape = 's32[2]{0}', space=sflag, size = 0x8, scoped, tag = 'scoped memory for tpu_custom_call.1']
    %10 = vsyncpa [#allocation5], 0
    %s11 = scalar_lea.sflag [#allocation5], 1
    %12 = vsyncpa %s11, 0
    loop: start=0, step=1, limit=4
    $region2: #{tpu_custom_call.1} parent=1 // loop_pre_header
      _
    $region3: #{tpu_custom_call.1} parent=1 // loop_header
      %s14 = sphi 0, %s18
      %p15 = scmp.ge.s32.totalorder %s14, 4
      %s24 = sphi 0, %s26
      %s27 = sphi 0, %s24
      %s28 = sphi 0, %s27
      %s44 = sphi 0, %s28
      %s48 = sphi 0, %s48
      %s50 = sphi 0, %s48
      %s51 = sphi 0, %s50
      %s65 = sphi 0, %s51
      %s69 = sphi 0, %s69
      %s71 = sphi 0, %s69
      %s72 = sphi 0, %s71
      %s86 = sphi 0, %s72
      %s90 = sphi 0, %s90
      %s92 = sphi 0, %s90
      %s93 = sphi 0, %s92
      %s107 = sphi 0, %s93
      %s111 = sphi 0, %s111
      %s113 = sphi 0, %s111
      %s114 = sphi 0, %s113
      %s128 = sphi 0, %s114
      %s134 = sphi 0, %s136
      %s137 = sphi 0, %s134
      %s138 = sphi 0, %s137
      %s154 = sphi 0, %s138
    $region4: #{tpu_custom_call.1} parent=1 // loop_header_branch
      %17 = sbr.rel (%p15) target = $region8
    $region5: #{tpu_custom_call.1} parent=1 // loop_body
      %s19 = ssub.s32 %s14, 1
      %s20 = ssub.s32 %s14, 2
      %s21 = sadd.s32 %s14, 1
      %s22 = ssub.s32 %s14, %s21
      %p23 = scmp.eq.s32.totalorder %s22, 0
      %s25 = sadd.s32 %s24, 1
      %s26 = scalar_select %p23, %s24, %s25
      %p29 = pneg %p23
      %p30 = scmp.eq.s32.totalorder %s14, 1
      %p31 = por %p29, %p30
      %p32 = scmp.ne.s32.totalorder %s24, %s27
      %p33 = scmp.eq.s32.totalorder %s14, 0
      %p34 = por %p32, %p33
      %p35 = scmp.ne.s32.totalorder %s24, %s27
      %p36 = scmp.eq.s32.totalorder %s19, 1
      %p37 = por %p35, %p36
      %p38 = scmp.ne.s32.totalorder %s27, %s28
      %p39 = scmp.eq.s32.totalorder %s19, 0
      %p40 = por %p38, %p39
      %p41 = scmp.ne.s32.totalorder %s27, %s28
      %p42 = scmp.eq.s32.totalorder %s20, 1
      %p43 = por %p41, %p42
      %p45 = scmp.ne.s32.totalorder %s28, %s44
      %p46 = scmp.eq.s32.totalorder %s20, 0
      %p47 = por %p45, %p46
      %s49 = sadd.s32 %s48, 1
      %p52 = scmp.eq.s32.totalorder %s14, 1
      %p53 = scmp.ne.s32.totalorder %s48, %s50
      %p54 = scmp.eq.s32.totalorder %s14, 0
      %p55 = por %p53, %p54
      %p56 = scmp.ne.s32.totalorder %s48, %s50
      %p57 = scmp.eq.s32.totalorder %s19, 1
      %p58 = por %p56, %p57
      %p59 = scmp.ne.s32.totalorder %s50, %s51
      %p60 = scmp.eq.s32.totalorder %s19, 0
      %p61 = por %p59, %p60
      %p62 = scmp.ne.s32.totalorder %s50, %s51
      %p63 = scmp.eq.s32.totalorder %s20, 1
      %p64 = por %p62, %p63
      %p66 = scmp.ne.s32.totalorder %s51, %s65
      %p67 = scmp.eq.s32.totalorder %s20, 0
      %p68 = por %p66, %p67
      %s70 = sadd.s32 %s69, 1
      %p73 = scmp.eq.s32.totalorder %s14, 1
      %p74 = scmp.ne.s32.totalorder %s69, %s71
      %p75 = scmp.eq.s32.totalorder %s14, 0
      %p76 = por %p74, %p75
      %p77 = scmp.ne.s32.totalorder %s69, %s71
      %p78 = scmp.eq.s32.totalorder %s19, 1
      %p79 = por %p77, %p78
      %p80 = scmp.ne.s32.totalorder %s71, %s72
      %p81 = scmp.eq.s32.totalorder %s19, 0
      %p82 = por %p80, %p81
      %p83 = scmp.ne.s32.totalorder %s71, %s72
      %p84 = scmp.eq.s32.totalorder %s20, 1
      %p85 = por %p83, %p84
      %p87 = scmp.ne.s32.totalorder %s72, %s86
      %p88 = scmp.eq.s32.totalorder %s20, 0
      %p89 = por %p87, %p88
      %s91 = sadd.s32 %s90, 1
      %p94 = scmp.eq.s32.totalorder %s14, 1
      %p95 = scmp.ne.s32.totalorder %s90, %s92
      %p96 = scmp.eq.s32.totalorder %s14, 0
      %p97 = por %p95, %p96
      %p98 = scmp.ne.s32.totalorder %s90, %s92
      %p99 = scmp.eq.s32.totalorder %s19, 1
      %p100 = por %p98, %p99
      %p101 = scmp.ne.s32.totalorder %s92, %s93
      %p102 = scmp.eq.s32.totalorder %s19, 0
      %p103 = por %p101, %p102
      %p104 = scmp.ne.s32.totalorder %s92, %s93
      %p105 = scmp.eq.s32.totalorder %s20, 1
      %p106 = por %p104, %p105
      %p108 = scmp.ne.s32.totalorder %s93, %s107
      %p109 = scmp.eq.s32.totalorder %s20, 0
      %p110 = por %p108, %p109
      %s112 = sadd.s32 %s111, 1
      %p115 = scmp.eq.s32.totalorder %s14, 1
      %p116 = scmp.ne.s32.totalorder %s111, %s113
      %p117 = scmp.eq.s32.totalorder %s14, 0
      %p118 = por %p116, %p117
      %p119 = scmp.ne.s32.totalorder %s111, %s113
      %p120 = scmp.eq.s32.totalorder %s19, 1
      %p121 = por %p119, %p120
      %p122 = scmp.ne.s32.totalorder %s113, %s114
      %p123 = scmp.eq.s32.totalorder %s19, 0
      %p124 = por %p122, %p123
      %p125 = scmp.ne.s32.totalorder %s113, %s114
      %p126 = scmp.eq.s32.totalorder %s20, 1
      %p127 = por %p125, %p126
      %p129 = scmp.ne.s32.totalorder %s114, %s128
      %p130 = scmp.eq.s32.totalorder %s20, 0
      %p131 = por %p129, %p130
      %s132 = ssub.s32 %s14, %s21
      %p133 = scmp.eq.s32.totalorder %s132, 0
      %s135 = sadd.s32 %s134, 1
      %s136 = scalar_select %p133, %s134, %s135
      %p139 = pneg %p133
      %p140 = scmp.eq.s32.totalorder %s14, 1
      %p141 = por %p139, %p140
      %p142 = scmp.ne.s32.totalorder %s134, %s137
      %p143 = scmp.eq.s32.totalorder %s14, 0
      %p144 = por %p142, %p143
      %p145 = scmp.ne.s32.totalorder %s134, %s137
      %p146 = scmp.eq.s32.totalorder %s19, 1
      %p147 = por %p145, %p146
      %p148 = scmp.ne.s32.totalorder %s137, %s138
      %p149 = scmp.eq.s32.totalorder %s19, 0
      %p150 = por %p148, %p149
      %p151 = scmp.ne.s32.totalorder %s137, %s138
      %p152 = scmp.eq.s32.totalorder %s20, 1
      %p153 = por %p151, %p152
      %p155 = scmp.ne.s32.totalorder %s138, %s154
      %p156 = scmp.eq.s32.totalorder %s20, 0
      %p157 = por %p155, %p156
      %p158 = scmp.le.s32.totalorder 1, %s14
      %p159 = scmp.lt.s32.totalorder %s14, 3
      %p160 = pnand %p158, %p159
      %p161 = pneg %p160
      // Predicated region
      $region9: #{tpu_custom_call.1} parent=5 // pred_check
        _
      $region10: #{tpu_custom_call.1} parent=5 // pred_check_branch
        %163 = sbr.rel (%p160) target = $region12
      $region11: #{tpu_custom_call.1} parent=5 // pred_region
        %s164 = ssub.s32 %s14, 1
        // Predicated region
        $region13: #{tpu_custom_call.1} parent=11 // pred_check
          %p165 = pneg %p61
        $region14: #{tpu_custom_call.1} parent=11 // pred_check_branch
          %167 = sbr.rel (%p165) target = $region16
        $region15: #{tpu_custom_call.1} parent=11 // pred_region
          _
        $region16: #{tpu_custom_call.1} parent=11 // pred_fallthru
          _
        // Predicated region
        $region17: #{tpu_custom_call.1} parent=11 // pred_check
          %p168 = pneg %p82
        $region18: #{tpu_custom_call.1} parent=11 // pred_check_branch
          %170 = sbr.rel (%p168) target = $region20
        $region19: #{tpu_custom_call.1} parent=11 // pred_region
          _
        $region20: #{tpu_custom_call.1} parent=11 // pred_fallthru
          _
        // Predicated region
        $region21: #{tpu_custom_call.1} parent=11 // pred_check
          %p171 = pneg %p103
        $region22: #{tpu_custom_call.1} parent=11 // pred_check_branch
          %173 = sbr.rel (%p171) target = $region24
        $region23: #{tpu_custom_call.1} parent=11 // pred_region
          _
        $region24: #{tpu_custom_call.1} parent=11 // pred_fallthru
          _
        // Predicated region
        $region25: #{tpu_custom_call.1} parent=11 // pred_check
          %p174 = pneg %p124
        $region26: #{tpu_custom_call.1} parent=11 // pred_check_branch
          %176 = sbr.rel (%p174) target = $region28
        $region27: #{tpu_custom_call.1} parent=11 // pred_region
          _
        $region28: #{tpu_custom_call.1} parent=11 // pred_fallthru
          _
      $region12: #{tpu_custom_call.1} parent=5 // pred_fallthru
        _
      %p177 = scmp.lt.s32.totalorder %s14, 2
      // Predicated region
      $region29: #{tpu_custom_call.1} parent=5 // pred_check
        %p178 = pneg %p177
      $region30: #{tpu_custom_call.1} parent=5 // pred_check_branch
        %180 = sbr.rel (%p178) target = $region32
      $region31: #{tpu_custom_call.1} parent=5 // pred_region
        // Predicated region
        $region33: #{tpu_custom_call.1} parent=31 // pred_check
          %p181 = pneg %p34
        $region34: #{tpu_custom_call.1} parent=31 // pred_check_branch
          %183 = sbr.rel (%p181) target = $region36
        $region35: #{tpu_custom_call.1} parent=31 // pred_region
          %p184 = scmp.lt.s32.totalorder %s14, 1
          %s185 = scalar_select %p184, %s14, 1
          %s186 = smul.addr %s185, 8
          %s187 = scalar_lea.vmem %s0, %s186
        $region36: #{tpu_custom_call.1} parent=31 // pred_fallthru
          _
      $region32: #{tpu_custom_call.1} parent=5 // pred_fallthru
        _
      %p188 = scmp.le.s32.totalorder 1, %s14
      %p189 = scmp.lt.s32.totalorder %s14, 3
      %p190 = pnand %p188, %p189
      %p191 = pneg %p190
      // Predicated region
      $region37: #{tpu_custom_call.1} parent=5 // pred_check
        _
      $region38: #{tpu_custom_call.1} parent=5 // pred_check_branch
        %193 = sbr.rel (%p190) target = $region40
      $region39: #{tpu_custom_call.1} parent=5 // pred_region
        %s194 = ssub.s32 %s14, 1
        %p195 = scmp.lt.s32.totalorder %s19, 1
        %s196 = scalar_select %p195, %s19, 1
        %s197 = smul.addr %s196, 8
        %s198 = scalar_lea.vmem %s0, %s197
        %p199 = pneg %p40
        %p200 = pneg %p37
        %p201 = pneg %p61
        %p202 = pneg %p58
        %p203 = pneg %p82
        %p204 = pneg %p79
        %p205 = pneg %p103
        %p206 = pneg %p100
        %p207 = pneg %p124
        %p208 = pneg %p121
        %p209 = pneg %p150
        %p210 = pneg %p147
        %s211 = sand.u32 %s137, 1
        %s212 = scalar_lea.sflag [#allocation5], %s211
        %s213 = sand.u32 %s137, 1
        %s214 = smul.addr %s213, 8
        %s215 = scalar_lea.vmem [#allocation4], %s214
        %p216 = scmp.lt.s32.totalorder %s19, 1
        %s217 = scalar_select %p216, %s19, 1
        %s218 = smul.addr %s217, 8
        %s219 = scalar_lea.vmem %s0, %s218
        %220 = vst [vmem:[#allocation2] sm:$0xff] 0.0
        %221 = vst [vmem:[#allocation2 + $0x10] sm:$0xff] 0.0
        %v222 = vld [vmem:[%s219] sm:$0xff]
        %223 = vst [vmem:[#allocation2 + $0x8] sm:$0xff] %v222
        %v224 = vlaneseq
        %v225 = vand.u32 %v224, 127
        %vm226 = vcmp.lt.s32.totalorder %v225, 16
        %v227 = vld [vmem:[%s1] sm:$0xff]
        %v228 = vld [vmem:[#allocation2] sm:$0xff]
        %v229 = vld [vmem:[#allocation2 + $0x8] sm:$0xff]
        %232 = vrot.lane.b32.xlu0 %v228, 2
        %v233 = vpop.permute.xlu0 %232
        %234 = vrot.lane.b32.xlu0 %v229, 2
        %v235 = vpop.permute.xlu0 %234
        %vm236 = vcmask 15360
        %v237 = vsel %vm236, %v233, %v235
        %vm239 = vcmask 64512
        %v241 = vsel %vm239, %v227, 0
        %243 = vmatpush.msra.mxu0 0.0
        %244 = vmatpush.msra.mxu0 0.0
        %245 = vmatpush.msra.mxu0 0.0
        %246 = vmatpush.msra.mxu0 0.0
        %247 = vmatpush.msra.mxu0 0.0
        %248 = vmatpush.msra.mxu0 0.0
        %249 = vmatpush.msra.mxu0 0.0
        %250 = vmatpush.msra.mxu0 0.0
        %251 = vmatpush.msra.mxu0 0.0
        %252 = vmatpush.msra.mxu0 0.0
        %253 = vmatpush.msra.mxu0 0.0
        %254 = vmatpush.msra.mxu0 0.0
        %255 = vmatpush.msra.mxu0 0.0
        %256 = vmatpush.msra.mxu0 0.0
        %257 = vmatpush.msra.mxu0 0.0
        %258 = vmatpush.msra.mxu0 %v237
        %259 = vmatmul.f32.gmra.mxu0 %v241
        %v260 = vpop.f32.mrf.mxu0
        %v261 = vadd.f32 0.0, %v260
        %262 = vdwg.mxu0
        %263 = vst [vmem:[#allocation3] sm:$0xff] %v261
        %s264 = scalar_lea.vmem %s1, 8
        %v265 = vld [vmem:[%s264] sm:$0xff]
        %v266 = vld [vmem:[#allocation2] sm:$0xff]
        %v267 = vld [vmem:[#allocation2 + $0x8] sm:$0xff]
        %270 = vrot.lane.b32.xlu0 %v266, 1
        %v271 = vpop.permute.xlu0 %270
        %272 = vrot.lane.b32.xlu0 %v267, 1
        %v273 = vpop.permute.xlu0 %272
        %vm274 = vcmask 7168
        %v275 = vsel %vm274, %v271, %v273
        %v278 = vsel %vm239, %v265, 0
        %280 = vmatpush.msra.mxu0 0.0
        %281 = vmatpush.msra.mxu0 0.0
        %282 = vmatpush.msra.mxu0 0.0
        %283 = vmatpush.msra.mxu0 0.0
        %284 = vmatpush.msra.mxu0 0.0
        %285 = vmatpush.msra.mxu0 0.0
        %286 = vmatpush.msra.mxu0 0.0
        %287 = vmatpush.msra.mxu0 0.0
        %288 = vmatpush.msra.mxu0 0.0
        %289 = vmatpush.msra.mxu0 0.0
        %290 = vmatpush.msra.mxu0 0.0
        %291 = vmatpush.msra.mxu0 0.0
        %292 = vmatpush.msra.mxu0 0.0
        %293 = vmatpush.msra.mxu0 0.0
        %294 = vmatpush.msra.mxu0 0.0
        %295 = vmatpush.msra.mxu0 %v275
        %296 = vmatmul.f32.gmra.mxu0 %v278
        %v297 = vpop.f32.mrf.mxu0
        %v298 = vadd.f32 0.0, %v297
        %299 = vdwg.mxu0
        %v300 = vld [vmem:[#allocation3] sm:$0xff]
        %v301 = vadd.f32 %v300, %v298
        %302 = vst [vmem:[#allocation3] sm:$0xff] %v301
        %s303 = scalar_lea.vmem %s1, 16
        %v304 = vld [vmem:[%s303] sm:$0xff]
        %v305 = vld [vmem:[#allocation2 + $0x8] sm:$0xff]
        %v307 = vsel %vm239, %v304, 0
        %309 = vmatpush.msra.mxu0 0.0
        %310 = vmatpush.msra.mxu0 0.0
        %311 = vmatpush.msra.mxu0 0.0
        %312 = vmatpush.msra.mxu0 0.0
        %313 = vmatpush.msra.mxu0 0.0
        %314 = vmatpush.msra.mxu0 0.0
        %315 = vmatpush.msra.mxu0 0.0
        %316 = vmatpush.msra.mxu0 0.0
        %317 = vmatpush.msra.mxu0 0.0
        %318 = vmatpush.msra.mxu0 0.0
        %319 = vmatpush.msra.mxu0 0.0
        %320 = vmatpush.msra.mxu0 0.0
        %321 = vmatpush.msra.mxu0 0.0
        %322 = vmatpush.msra.mxu0 0.0
        %323 = vmatpush.msra.mxu0 0.0
        %324 = vmatpush.msra.mxu0 %v305
        %325 = vmatmul.f32.gmra.mxu0 %v307
        %v326 = vpop.f32.mrf.mxu0
        %v327 = vadd.f32 0.0, %v326
        %328 = vdwg.mxu0
        %v329 = vld [vmem:[#allocation3] sm:$0xff]
        %v330 = vadd.f32 %v329, %v327
        %331 = vst [vmem:[#allocation3] sm:$0xff] %v330
        %s332 = scalar_lea.vmem %s1, 24
        %v333 = vld [vmem:[%s332] sm:$0xff]
        %v334 = vld [vmem:[#allocation2 + $0x8] sm:$0xff]
        %v335 = vld [vmem:[#allocation2 + $0x10] sm:$0xff]
        %338 = vrot.lane.b32.xlu0 %v334, 127
        %v339 = vpop.permute.xlu0 %338
        %340 = vrot.lane.b32.xlu0 %v335, 127
        %v341 = vpop.permute.xlu0 %340
        %vm342 = vcmask 1039360
        %v343 = vsel %vm342, %v339, %v341
        %v346 = vsel %vm239, %v333, 0
        %348 = vmatpush.msra.mxu0 0.0
        %349 = vmatpush.msra.mxu0 0.0
        %350 = vmatpush.msra.mxu0 0.0
        %351 = vmatpush.msra.mxu0 0.0
        %352 = vmatpush.msra.mxu0 0.0
        %353 = vmatpush.msra.mxu0 0.0
        %354 = vmatpush.msra.mxu0 0.0
        %355 = vmatpush.msra.mxu0 0.0
        %356 = vmatpush.msra.mxu0 0.0
        %357 = vmatpush.msra.mxu0 0.0
        %358 = vmatpush.msra.mxu0 0.0
        %359 = vmatpush.msra.mxu0 0.0
        %360 = vmatpush.msra.mxu0 0.0
        %361 = vmatpush.msra.mxu0 0.0
        %362 = vmatpush.msra.mxu0 0.0
        %363 = vmatpush.msra.mxu0 %v343
        %364 = vmatmul.f32.gmra.mxu0 %v346
        %v365 = vpop.f32.mrf.mxu0
        %v366 = vadd.f32 0.0, %v365
        %367 = vdwg.mxu0
        %v368 = vld [vmem:[#allocation3] sm:$0xff]
        %v369 = vadd.f32 %v368, %v366
        %370 = vst [vmem:[#allocation3] sm:$0xff] %v369
        %s371 = scalar_lea.vmem %s1, 32
        %v372 = vld [vmem:[%s371] sm:$0xff]
        %v373 = vld [vmem:[#allocation2 + $0x8] sm:$0xff]
        %v374 = vld [vmem:[#allocation2 + $0x10] sm:$0xff]
        %377 = vrot.lane.b32.xlu0 %v373, 126
        %v378 = vpop.permute.xlu0 %377
        %379 = vrot.lane.b32.xlu0 %v374, 126
        %v380 = vpop.permute.xlu0 %379
        %vm381 = vcmask 1031168
        %v382 = vsel %vm381, %v378, %v380
        %v385 = vsel %vm239, %v372, 0
        %387 = vmatpush.msra.mxu0 0.0
        %388 = vmatpush.msra.mxu0 0.0
        %389 = vmatpush.msra.mxu0 0.0
        %390 = vmatpush.msra.mxu0 0.0
        %391 = vmatpush.msra.mxu0 0.0
        %392 = vmatpush.msra.mxu0 0.0
        %393 = vmatpush.msra.mxu0 0.0
        %394 = vmatpush.msra.mxu0 0.0
        %395 = vmatpush.msra.mxu0 0.0
        %396 = vmatpush.msra.mxu0 0.0
        %397 = vmatpush.msra.mxu0 0.0
        %398 = vmatpush.msra.mxu0 0.0
        %399 = vmatpush.msra.mxu0 0.0
        %400 = vmatpush.msra.mxu0 0.0
        %401 = vmatpush.msra.mxu0 0.0
        %402 = vmatpush.msra.mxu0 %v382
        %403 = vmatmul.f32.gmra.mxu0 %v385
        %v404 = vpop.f32.mrf.mxu0
        %v405 = vadd.f32 0.0, %v404
        %406 = vdwg.mxu0
        %v407 = vld [vmem:[#allocation3] sm:$0xff]
        %v408 = vadd.f32 %v407, %v405
        %409 = vst [vmem:[#allocation3] sm:$0xff] %v408
        %v410 = vld [vmem:[#allocation3] sm:$0xff]
        %v411 = vld [vmem:[%s2] sm:$0xff]
        %413 = vset.pattern.permute.xlu0 0
        %414 = vperm.xlu0 %413, %v411
        %v415 = vpop.permute.xlu0 %414
        %v417 = vadd.f32 %v410, %v415
        %v418 = vmax.f32 %v417, 0.0
        %v419 = vsel %vm226, 1, 0
        %vm420 = vcmp.eq.s32.totalorder %v419, 1
        %v421 = vsel %vm420, %v418, 0.0
        %422 = vst [vmem:[#allocation2 + $0x8] sm:$0xff] %v421
        %s423 = scalar_lea.vmem %s1, 40
        %v424 = vld [vmem:[%s423] sm:$0xff]
        %v425 = vld [vmem:[#allocation2] sm:$0xff]
        %v426 = vld [vmem:[#allocation2 + $0x8] sm:$0xff]
        %429 = vrot.lane.b32.xlu0 %v425, 2
        %v430 = vpop.permute.xlu0 %429
        %431 = vrot.lane.b32.xlu0 %v426, 2
        %v432 = vpop.permute.xlu0 %431
        %v433 = vsel %vm236, %v430, %v432
        %v436 = vsel %vm239, %v424, 0
        %438 = vmatpush.msra.mxu0 0.0
        %439 = vmatpush.msra.mxu0 0.0
        %440 = vmatpush.msra.mxu0 0.0
        %441 = vmatpush.msra.mxu0 0.0
        %442 = vmatpush.msra.mxu0 0.0
        %443 = vmatpush.msra.mxu0 0.0
        %444 = vmatpush.msra.mxu0 0.0
        %445 = vmatpush.msra.mxu0 0.0
        %446 = vmatpush.msra.mxu0 0.0
        %447 = vmatpush.msra.mxu0 0.0
        %448 = vmatpush.msra.mxu0 0.0
        %449 = vmatpush.msra.mxu0 0.0
        %450 = vmatpush.msra.mxu0 0.0
        %451 = vmatpush.msra.mxu0 0.0
        %452 = vmatpush.msra.mxu0 0.0
        %453 = vmatpush.msra.mxu0 %v433
        %454 = vmatmul.f32.gmra.mxu0 %v436
        %v455 = vpop.f32.mrf.mxu0
        %v456 = vadd.f32 0.0, %v455
        %457 = vdwg.mxu0
        %458 = vst [vmem:[#allocation3] sm:$0xff] %v456
        %s459 = scalar_lea.vmem %s1, 48
        %v460 = vld [vmem:[%s459] sm:$0xff]
        %v461 = vld [vmem:[#allocation2] sm:$0xff]
        %v462 = vld [vmem:[#allocation2 + $0x8] sm:$0xff]
        %465 = vrot.lane.b32.xlu0 %v461, 1
        %v466 = vpop.permute.xlu0 %465
        %467 = vrot.lane.b32.xlu0 %v462, 1
        %v468 = vpop.permute.xlu0 %467
        %v469 = vsel %vm274, %v466, %v468
        %v472 = vsel %vm239, %v460, 0
        %474 = vmatpush.msra.mxu0 0.0
        %475 = vmatpush.msra.mxu0 0.0
        %476 = vmatpush.msra.mxu0 0.0
        %477 = vmatpush.msra.mxu0 0.0
        %478 = vmatpush.msra.mxu0 0.0
        %479 = vmatpush.msra.mxu0 0.0
        %480 = vmatpush.msra.mxu0 0.0
        %481 = vmatpush.msra.mxu0 0.0
        %482 = vmatpush.msra.mxu0 0.0
        %483 = vmatpush.msra.mxu0 0.0
        %484 = vmatpush.msra.mxu0 0.0
        %485 = vmatpush.msra.mxu0 0.0
        %486 = vmatpush.msra.mxu0 0.0
        %487 = vmatpush.msra.mxu0 0.0
        %488 = vmatpush.msra.mxu0 0.0
        %489 = vmatpush.msra.mxu0 %v469
        %490 = vmatmul.f32.gmra.mxu0 %v472
        %v491 = vpop.f32.mrf.mxu0
        %v492 = vadd.f32 0.0, %v491
        %493 = vdwg.mxu0
        %v494 = vld [vmem:[#allocation3] sm:$0xff]
        %v495 = vadd.f32 %v494, %v492
        %496 = vst [vmem:[#allocation3] sm:$0xff] %v495
        %s497 = scalar_lea.vmem %s1, 56
        %v498 = vld [vmem:[%s497] sm:$0xff]
        %v499 = vld [vmem:[#allocation2 + $0x8] sm:$0xff]
        %v501 = vsel %vm239, %v498, 0
        %503 = vmatpush.msra.mxu0 0.0
        %504 = vmatpush.msra.mxu0 0.0
        %505 = vmatpush.msra.mxu0 0.0
        %506 = vmatpush.msra.mxu0 0.0
        %507 = vmatpush.msra.mxu0 0.0
        %508 = vmatpush.msra.mxu0 0.0
        %509 = vmatpush.msra.mxu0 0.0
        %510 = vmatpush.msra.mxu0 0.0
        %511 = vmatpush.msra.mxu0 0.0
        %512 = vmatpush.msra.mxu0 0.0
        %513 = vmatpush.msra.mxu0 0.0
        %514 = vmatpush.msra.mxu0 0.0
        %515 = vmatpush.msra.mxu0 0.0
        %516 = vmatpush.msra.mxu0 0.0
        %517 = vmatpush.msra.mxu0 0.0
        %518 = vmatpush.msra.mxu0 %v499
        %519 = vmatmul.f32.gmra.mxu0 %v501
        %v520 = vpop.f32.mrf.mxu0
        %v521 = vadd.f32 0.0, %v520
        %522 = vdwg.mxu0
        %v523 = vld [vmem:[#allocation3] sm:$0xff]
        %v524 = vadd.f32 %v523, %v521
        %525 = vst [vmem:[#allocation3] sm:$0xff] %v524
        %s526 = scalar_lea.vmem %s1, 64
        %v527 = vld [vmem:[%s526] sm:$0xff]
        %v528 = vld [vmem:[#allocation2 + $0x8] sm:$0xff]
        %v529 = vld [vmem:[#allocation2 + $0x10] sm:$0xff]
        %532 = vrot.lane.b32.xlu0 %v528, 127
        %v533 = vpop.permute.xlu0 %532
        %534 = vrot.lane.b32.xlu0 %v529, 127
        %v535 = vpop.permute.xlu0 %534
        %v536 = vsel %vm342, %v533, %v535
        %v539 = vsel %vm239, %v527, 0
        %541 = vmatpush.msra.mxu0 0.0
        %542 = vmatpush.msra.mxu0 0.0
        %543 = vmatpush.msra.mxu0 0.0
        %544 = vmatpush.msra.mxu0 0.0
        %545 = vmatpush.msra.mxu0 0.0
        %546 = vmatpush.msra.mxu0 0.0
        %547 = vmatpush.msra.mxu0 0.0
        %548 = vmatpush.msra.mxu0 0.0
        %549 = vmatpush.msra.mxu0 0.0
        %550 = vmatpush.msra.mxu0 0.0
        %551 = vmatpush.msra.mxu0 0.0
        %552 = vmatpush.msra.mxu0 0.0
        %553 = vmatpush.msra.mxu0 0.0
        %554 = vmatpush.msra.mxu0 0.0
        %555 = vmatpush.msra.mxu0 0.0
        %556 = vmatpush.msra.mxu0 %v536
        %557 = vmatmul.f32.gmra.mxu0 %v539
        %v558 = vpop.f32.mrf.mxu0
        %v559 = vadd.f32 0.0, %v558
        %560 = vdwg.mxu0
        %v561 = vld [vmem:[#allocation3] sm:$0xff]
        %v562 = vadd.f32 %v561, %v559
        %563 = vst [vmem:[#allocation3] sm:$0xff] %v562
        %s564 = scalar_lea.vmem %s1, 72
        %v565 = vld [vmem:[%s564] sm:$0xff]
        %v566 = vld [vmem:[#allocation2 + $0x8] sm:$0xff]
        %v567 = vld [vmem:[#allocation2 + $0x10] sm:$0xff]
        %570 = vrot.lane.b32.xlu0 %v566, 126
        %v571 = vpop.permute.xlu0 %570
        %572 = vrot.lane.b32.xlu0 %v567, 126
        %v573 = vpop.permute.xlu0 %572
        %v574 = vsel %vm381, %v571, %v573
        %v577 = vsel %vm239, %v565, 0
        %579 = vmatpush.msra.mxu0 0.0
        %580 = vmatpush.msra.mxu0 0.0
        %581 = vmatpush.msra.mxu0 0.0
        %582 = vmatpush.msra.mxu0 0.0
        %583 = vmatpush.msra.mxu0 0.0
        %584 = vmatpush.msra.mxu0 0.0
        %585 = vmatpush.msra.mxu0 0.0
        %586 = vmatpush.msra.mxu0 0.0
        %587 = vmatpush.msra.mxu0 0.0
        %588 = vmatpush.msra.mxu0 0.0
        %589 = vmatpush.msra.mxu0 0.0
        %590 = vmatpush.msra.mxu0 0.0
        %591 = vmatpush.msra.mxu0 0.0
        %592 = vmatpush.msra.mxu0 0.0
        %593 = vmatpush.msra.mxu0 0.0
        %594 = vmatpush.msra.mxu0 %v574
        %595 = vmatmul.f32.gmra.mxu0 %v577
        %v596 = vpop.f32.mrf.mxu0
        %v597 = vadd.f32 0.0, %v596
        %598 = vdwg.mxu0
        %v599 = vld [vmem:[#allocation3] sm:$0xff]
        %v600 = vadd.f32 %v599, %v597
        %601 = vst [vmem:[#allocation3] sm:$0xff] %v600
        %v602 = vld [vmem:[#allocation3] sm:$0xff]
        %s603 = scalar_lea.vmem %s2, 8
        %v604 = vld [vmem:[%s603] sm:$0xff]
        %606 = vset.pattern.permute.xlu0 0
        %607 = vperm.xlu0 %606, %v604
        %v608 = vpop.permute.xlu0 %607
        %v610 = vadd.f32 %v602, %v608
        %v611 = vmax.f32 %v610, 0.0
        %v612 = vsel %vm420, %v611, 0.0
        %613 = vst [vmem:[#allocation2 + $0x8] sm:$0xff] %v612
        %v614 = vld [vmem:[%s3] sm:$0xff]
        %v615 = vld [vmem:[%s4] sm:$0xff]
        %v616 = vlaneseq
        %v617 = vshrl.u32 %v616, 7
        %vm618 = vcmp.lt.s32.totalorder %v617, 8
        %vm619 = vmand %vm618, %vm226
        %v620 = vld [vmem:[#allocation2 + $0x8] sm:$0xff]
        %v621 = vld [vmem:[%s219] sm:$0xff]
        %v622 = vadd.f32 %v620, %v621
        %623 = vadd.xlane.f32.xlu0 %v622
        %v624 = vpop.xlane.xlu0 %623
        %v625 = vrot.slane %v624, 4
        %v626 = vadd.f32 %v624, %v625
        %v627 = vrot.slane %v626, 2
        %v628 = vadd.f32 %v626, %v627
        %v629 = vrot.slane %v628, 1
        %v630 = vadd.f32 %v628, %v629
        %s631 = vtos %v630
        %v632 = vstv %s631
        %v633 = vmul.f32 %v632, 0.0078125
        %v634 = vsub.f32 %v622, %v633
        %v635 = vsel %vm619, %v634, 0.0
        %v636 = vmul.f32 %v635, %v635
        %637 = vadd.xlane.f32.xlu0 %v636
        %v638 = vpop.xlane.xlu0 %637
        %v639 = vrot.slane %v638, 4
        %v640 = vadd.f32 %v638, %v639
        %v641 = vrot.slane %v640, 2
        %v642 = vadd.f32 %v640, %v641
        %v643 = vrot.slane %v642, 1
        %v644 = vadd.f32 %v642, %v643
        %s645 = vtos %v644
        %v646 = vstv %s645
        %v647 = vmul.f32 %v646, 0.0078125
        %v648 = vadd.f32 %v647, 1e-05
        %v649 = vrsqrt.pop %v648
        %v650 = vmul.f32 %v649, %v648
        %v651 = vmul.f32 %v650, %v649
        %v652 = vmul.f32 0.5, %v651
        %v653 = vsub.f32 1.5, %v652
        %v654 = vmul.f32 %v649, %v653
        %vm655 = vweird.f32 %v648
        %vm656 = vweird.f32 %v649
        %vm657 = vmor %vm655, %vm656
        %v658 = vsel %vm657, %v649, %v654
        %v659 = vmul.f32 %v635, %v658
        %v660 = vmul.f32 %v659, %v614
        %v661 = vadd.f32 %v660, %v615
        %662 = vst [vmem:[%s215] sm:$0xff] %v661
        %s663 = sand.u32 %s137, 1
        %s664 = scalar_lea.sflag [#allocation5], %s663
        %s665 = sand.u32 %s137, 1
        %s666 = smul.addr %s665, 8
        %s667 = scalar_lea.vmem [#allocation4], %s666
        // Predicated region
        $region41: #{tpu_custom_call.1} parent=39 // pred_check
          %p668 = pneg %p147
        $region42: #{tpu_custom_call.1} parent=39 // pred_check_branch
          %670 = sbr.rel (%p668) target = $region44
        $region43: #{tpu_custom_call.1} parent=39 // pred_region
          %672 = vsyncadd %s664, 0
          %s673 = smul.addr %s19, 8
          %s674 = scalar_lea.hbm %s5, %s673
          %s676 = sshll.u32 %s667, 4
          %s677 = int_to_ptr.vmem [resolvable:$true] %s676
          %s678 = sshll.u32 %s674, 4
          %s679 = int_to_ptr.hbm [resolvable:$true] %s678
          %681 = dma.vmem_to_hbm [thread:$0]  %s677, 128, %s679, %s664
        $region44: #{tpu_custom_call.1} parent=39 // pred_fallthru
          _
      $region40: #{tpu_custom_call.1} parent=5 // pred_fallthru
        _
      %p682 = scmp.le.s32.totalorder 2, %s14
      // Predicated region
      $region45: #{tpu_custom_call.1} parent=5 // pred_check
        %p683 = pneg %p682
      $region46: #{tpu_custom_call.1} parent=5 // pred_check_branch
        %685 = sbr.rel (%p683) target = $region48
      $region47: #{tpu_custom_call.1} parent=5 // pred_region
        %s686 = ssub.s32 %s14, 2
        // Predicated region
        $region49: #{tpu_custom_call.1} parent=47 // pred_check
          %p687 = pneg %p153
        $region50: #{tpu_custom_call.1} parent=47 // pred_check_branch
          %689 = sbr.rel (%p687) target = $region52
        $region51: #{tpu_custom_call.1} parent=47 // pred_region
          %s690 = sand.u32 %s138, 1
          %s691 = scalar_lea.sflag [#allocation5], %s690
          %s692 = sand.u32 %s138, 1
          %s693 = smul.addr %s692, 8
          %s694 = scalar_lea.vmem [#allocation4], %s693
          %696 = dma.done %s691, 128
        $region52: #{tpu_custom_call.1} parent=47 // pred_fallthru
          _
      $region48: #{tpu_custom_call.1} parent=5 // pred_fallthru
        _
    $region6: #{tpu_custom_call.1} parent=1 // loop_footer
      %s18 = sadd.s32 1, %s14
    $region7: #{tpu_custom_call.1} parent=1 // loop_footer_branch
      %13 = sbr.rel target = $region3
    $region8: #{tpu_custom_call.1} parent=1 // loop_exit
      _
    %697 = vsyncpa [#allocation5], 1
    %s698 = scalar_lea.sflag [#allocation5], 1
    %699 = vsyncpa %s698, 1

</llo_original>
